<compile_context>
chip_gen: v5e
topology: v5e:2x2
jax: 0.10.0
libtpu: 0.0.40
codegen_flags: <defaults>
</compile_context>

<pallas_src>
import functools

import jax
import jax.numpy as jnp
from jax.experimental import pallas as pl
from jax.experimental.pallas import tpu as pltpu


def _netlin_kernel(x_ref, w_ref, o_ref, *, compute_dtype):
    # x_ref: [Cin, T]   w_ref: [Cout, Cin]   o_ref: [Cout, T]
    x = x_ref[...].astype(compute_dtype)
    w = w_ref[...].astype(compute_dtype)
    y = jnp.dot(w, x, preferred_element_type=jnp.float32)
    o_ref[...] = y.astype(o_ref.dtype)


def net_lin_layer(x, weight, *, tile_hw=1024, compute_dtype=jnp.float32):
    """1x1 conv, no bias.  x: [B, Cin, H, W]; weight: [Cout, Cin] or [Cout, Cin, 1, 1]."""
    if weight.ndim == 4:
        weight = weight[:, :, 0, 0]
    B, Cin, H, W = x.shape
    Cout = weight.shape[0]
    hw = H * W

    x2 = x.reshape(B, Cin, hw)

    # Lane-dense spatial tile: multiple of 128, capped at tile_hw.
    tile = min(int(tile_hw), ((hw + 127) // 128) * 128)
    tile = max(tile, 128)
    hw_pad = ((hw + tile - 1) // tile) * tile
    if hw_pad != hw:
        # Zero padding is harmless for a linear op; padded columns are sliced off below.
        x2 = jnp.pad(x2, ((0, 0), (0, 0), (0, hw_pad - hw)))

    grid = (B, hw_pad // tile)

    flops = 2 * B * Cout * Cin * hw
    bytes_accessed = 4 * (B * Cin * hw + B * Cout * hw + Cout * Cin)
    cost = pl.CostEstimate(flops=int(flops), transcendentals=0,
                           bytes_accessed=int(bytes_accessed))

    kernel = functools.partial(_netlin_kernel, compute_dtype=compute_dtype)

    y = pl.pallas_call(
        kernel,
        out_shape=jax.ShapeDtypeStruct((B, Cout, hw_pad), x.dtype),
        grid_spec=pltpu.PrefetchScalarGridSpec(
            num_scalar_prefetch=0,
            grid=grid,
            in_specs=[
                # activations: batch squeezed, full channel dim, lane-dense spatial tile
                pl.BlockSpec((None, Cin, tile), lambda b, j: (b, 0, j)),
                # weight: full array, constant block index -> resident in VMEM
                pl.BlockSpec((Cout, Cin), lambda b, j: (0, 0)),
            ],
            out_specs=pl.BlockSpec((None, Cout, tile), lambda b, j: (b, 0, j)),
        ),
        compiler_params=pltpu.CompilerParams(
            dimension_semantics=("parallel", "parallel")),
        cost_estimate=cost,
    )(x2, weight)

    return y[:, :, :hw].reshape(B, Cout, H, W)


def reference_forward(x, weight):
    """Pure-JAX reference matching the PyTorch 1x1-conv forward."""
    if weight.ndim == 4:
        weight = weight[:, :, 0, 0]
    return jnp.einsum('bchw,oc->bohw', x, weight,
                      precision=jax.lax.Precision.HIGHEST)


if __name__ == "__main__":
    key = jax.random.PRNGKey(0)
    kx, kw = jax.random.split(key)

    # NetLinLayer(chn_in=64, chn_out=1) on a small feature map.
    B, Cin, H, W = 2, 64, 16, 16
    Cout = 1

    x = jax.random.normal(kx, (B, Cin, H, W), jnp.float32)
    # Conv2d weight [Cout, Cin, 1, 1], kaiming-ish scale.
    weight = jax.random.normal(kw, (Cout, Cin, 1, 1), jnp.float32) / jnp.sqrt(
        jnp.float32(Cin))

    ref = reference_forward(x, weight)

    # f32-compute path (default).
    out = net_lin_layer(x, weight)
    jax.block_until_ready(out)
    assert out.shape == (B, Cout, H, W)
    assert jnp.allclose(out, ref, atol=5e-3, rtol=5e-3)

    # bf16 matmul inputs with f32 accumulation (perf option) — looser tolerance.
    out_bf16 = net_lin_layer(x, weight, compute_dtype=jnp.bfloat16)
    jax.block_until_ready(out_bf16)
    assert jnp.allclose(out_bf16, ref, atol=5e-2, rtol=5e-2)

    print("KERNEL_OK")
</pallas_src>

<mosaic_0001>
module attributes {stable_mosaic.version = 11 : i64} {
  func.func @_netlin_kernel(%arg0: i32, %arg1: i32, %arg2: memref<1x64x256xf32, #tpu.memory_space<vmem>>, %arg3: memref<1x64xf32, #tpu.memory_space<vmem>>, %arg4: memref<1x1x256xf32, #tpu.memory_space<vmem>>) attributes {dimension_semantics = [#tpu.dimension_semantics<parallel>, #tpu.dimension_semantics<parallel>], iteration_bounds = array<i64: 2, 1>, scalar_prefetch = 0 : i64, scratch_operands = 0 : i64, tpu.core_type = #tpu.core_type<tc>, window_params = [{transform_indices = @transform_0, window_bounds = array<i64: 1, 64, 256>}, {pipeline_mode = #tpu.pipeline_mode<synchronous>, transform_indices = @transform_1, window_bounds = array<i64: 1, 64>}, {transform_indices = @transform_2, window_bounds = array<i64: 1, 1, 256>}]} {
    %c0 = arith.constant 0 : index
    %c0_0 = arith.constant 0 : index
    %c0_1 = arith.constant 0 : index
    %0 = vector.load %arg2[%c0, %c0_0, %c0_1] : memref<1x64x256xf32, #tpu.memory_space<vmem>>, vector<1x64x256xf32>
    %1 = vector.shape_cast %0 : vector<1x64x256xf32> to vector<64x256xf32>
    %c0_2 = arith.constant 0 : index
    %c0_3 = arith.constant 0 : index
    %2 = vector.load %arg3[%c0_2, %c0_3] : memref<1x64xf32, #tpu.memory_space<vmem>>, vector<1x64xf32>
    %cst = arith.constant dense<0.000000e+00> : vector<1x256xf32>
    %3 = tpu.matmul %2, %1, %cst {dimension_numbers = #tpu.dot_dimension_numbers<[1], [0], [0], [1], [0, 0, 1, 1], [], []>} : vector<1x64xf32>, vector<64x256xf32>, vector<1x256xf32> -> vector<1x256xf32>
    %c0_4 = arith.constant 0 : index
    %c0_5 = arith.constant 0 : index
    %c0_6 = arith.constant 0 : index
    %4 = vector.load %arg4[%c0_4, %c0_5, %c0_6] : memref<1x1x256xf32, #tpu.memory_space<vmem>>, vector<1x1x256xf32>
    %5 = vector.shape_cast %4 : vector<1x1x256xf32> to vector<1x256xf32>
    %6 = vector.shape_cast %3 : vector<1x256xf32> to vector<1x1x256xf32>
    tpu.vector_store %arg4[%c0_4, %c0_5, %c0_6], %6 {strides = array<i32>} : memref<1x1x256xf32, #tpu.memory_space<vmem>>, vector<1x1x256xf32>,
    return
  }
  func.func @transform_0(%arg0: i32, %arg1: i32) -> (i32, i32, i32) {
    %c0_i32 = arith.constant 0 : i32
    %c0_i32_0 = arith.constant 0 : i32
    return %arg0, %c0_i32, %arg1 : i32, i32, i32
  }
  func.func @transform_1(%arg0: i32, %arg1: i32) -> (i32, i32) {
    %c0_i32 = arith.constant 0 : i32
    %c0_i32_0 = arith.constant 0 : i32
    %c0_i32_1 = arith.constant 0 : i32
    return %c0_i32, %c0_i32_0 : i32, i32
  }
  func.func @transform_2(%arg0: i32, %arg1: i32) -> (i32, i32, i32) {
    %c0_i32 = arith.constant 0 : i32
    %c0_i32_0 = arith.constant 0 : i32
    return %arg0, %c0_i32, %arg1 : i32, i32, i32
  }
}

</mosaic_0001>

<llo_original>
// kernel: tpu_custom_call.1
$region0: #{tpu_custom_call.1}
  #allocation0 [shape = 'u32[]', space=smem, size = 0x4, offset = 0x4, fixed_abs, tag = 'smem constant byte address 0x4 - core index']
  #allocation1 [shape = 'u32[72,128]{1,0:T(1,128)}', space=vmem, size = 0x9000, scoped, tag = 'internal scratch']
  %s0 = inlined_call_operand.hbm [shape: f32[2,64,256], index: 0, kind: input, shape index: {}]
  %s1 = inlined_call_operand.hbm [shape: f32[1,64], index: 1, kind: input, shape index: {}]
  %s2 = inlined_call_operand.hbm [shape: f32[2,1,256], index: 2, kind: output, shape index: {}]
  %s3 = sld [smem:[#allocation0]]
  $region49: #{tpu_custom_call.1} parent=0
    _
  %s5 = ssub.s32 1, %s3
  %s6 = scalar_select 0, %s5, %s3
  $region1: #{tpu_custom_call.1} parent=0
    #allocation2 [shape = 'u8[131072]{0}', space=vmem, size = 0x20000, scoped, tag = 'input window, operand 0']
    #allocation3 [shape = 's32[2]{0}', space=sflag, size = 0x8, scoped, tag = 'scoped memory for tpu_custom_call.1']
    #allocation4 [shape = 's32[2]{0}', space=sflag, size = 0x8, scoped, tag = 'scoped memory for tpu_custom_call.1']
    #allocation5 [shape = 'u8[512]{0}', space=vmem, size = 0x400, scoped, tag = 'input window, operand 1, single buffered']
    #allocation6 [shape = 's32[1]{0}', space=sflag, size = 0x4, scoped, tag = 'scoped memory for tpu_custom_call.1']
    #allocation7 [shape = 'u8[2048]{0}', space=vmem, size = 0x800, scoped, tag = 'output window, operand 0']
    %7 = vsyncpa [#allocation3], 0
    %s8 = scalar_lea.sflag [#allocation3], 1
    %9 = vsyncpa %s8, 0
    %10 = vsyncpa [#allocation6], 0
    %11 = vsyncpa [#allocation4], 0
    %s12 = scalar_lea.sflag [#allocation4], 1
    %13 = vsyncpa %s12, 0
    loop: start=0, step=1, limit=4
    $region2: #{tpu_custom_call.1} parent=1 // loop_pre_header
      _
    $region3: #{tpu_custom_call.1} parent=1 // loop_header
      %s15 = sphi 0, %s19
      %p16 = scmp.ge.s32.totalorder %s15, 4
      %s22 = sphi 0, %s34
      %s23 = sphi 0, %s30
      %s24 = sphi 0, %s22
      %s25 = sphi 0, %s23
      %s26 = sphi 0, %s24
      %s27 = sphi 0, %s25
      %s39 = sphi 0, %s41
      %s42 = sphi 0, %s39
      %s43 = sphi 0, %s42
      %s59 = sphi 0, %s43
      %s63 = sphi 0, %s63
      %s65 = sphi 0, %s63
      %s66 = sphi 0, %s65
      %s80 = sphi 0, %s66
      %s88 = sphi 0, %s90
      %s91 = sphi 0, %s88
      %s92 = sphi 0, %s91
      %s108 = sphi 0, %s92
    $region4: #{tpu_custom_call.1} parent=1 // loop_header_branch
      %18 = sbr.rel (%p16) target = $region8
    $region5: #{tpu_custom_call.1} parent=1 // loop_body
      %s20 = ssub.s32 %s15, 1
      %s21 = ssub.s32 %s15, 2
      %s28 = sadd.s32 1, %s23
      %p29 = scmp.ge.s32.totalorder %s28, 1
      %s30 = scalar_select %p29, 0, %s28
      %s31 = sadd.s32 1, %s22
      %s32 = scalar_select %p29, %s31, %s22
      %p33 = scmp.ge.s32.totalorder %s32, 2
      %s34 = scalar_select %p33, 0, %s32
      %s35 = ssub.s32 %s22, %s34
      %s36 = ssub.s32 %s23, %s30
      %s37 = sor.u32 %s35, %s36
      %p38 = scmp.eq.s32.totalorder %s37, 0
      %s40 = sadd.s32 %s39, 1
      %s41 = scalar_select %p38, %s39, %s40
      %p44 = pneg %p38
      %p45 = scmp.eq.s32.totalorder %s15, 1
      %p46 = por %p44, %p45
      %p47 = scmp.ne.s32.totalorder %s39, %s42
      %p48 = scmp.eq.s32.totalorder %s15, 0
      %p49 = por %p47, %p48
      %p50 = scmp.ne.s32.totalorder %s39, %s42
      %p51 = scmp.eq.s32.totalorder %s20, 1
      %p52 = por %p50, %p51
      %p53 = scmp.ne.s32.totalorder %s42, %s43
      %p54 = scmp.eq.s32.totalorder %s20, 0
      %p55 = por %p53, %p54
      %p56 = scmp.ne.s32.totalorder %s42, %s43
      %p57 = scmp.eq.s32.totalorder %s21, 1
      %p58 = por %p56, %p57
      %p60 = scmp.ne.s32.totalorder %s43, %s59
      %p61 = scmp.eq.s32.totalorder %s21, 0
      %p62 = por %p60, %p61
      %s64 = sadd.s32 %s63, 1
      %p67 = scmp.eq.s32.totalorder %s15, 1
      %p68 = scmp.ne.s32.totalorder %s63, %s65
      %p69 = scmp.eq.s32.totalorder %s15, 0
      %p70 = por %p68, %p69
      %p71 = scmp.ne.s32.totalorder %s63, %s65
      %p72 = scmp.eq.s32.totalorder %s20, 1
      %p73 = por %p71, %p72
      %p74 = scmp.ne.s32.totalorder %s65, %s66
      %p75 = scmp.eq.s32.totalorder %s20, 0
      %p76 = por %p74, %p75
      %p77 = scmp.ne.s32.totalorder %s65, %s66
      %p78 = scmp.eq.s32.totalorder %s21, 1
      %p79 = por %p77, %p78
      %p81 = scmp.ne.s32.totalorder %s66, %s80
      %p82 = scmp.eq.s32.totalorder %s21, 0
      %p83 = por %p81, %p82
      %s84 = ssub.s32 %s22, %s34
      %s85 = ssub.s32 %s23, %s30
      %s86 = sor.u32 %s84, %s85
      %p87 = scmp.eq.s32.totalorder %s86, 0
      %s89 = sadd.s32 %s88, 1
      %s90 = scalar_select %p87, %s88, %s89
      %p93 = pneg %p87
      %p94 = scmp.eq.s32.totalorder %s15, 1
      %p95 = por %p93, %p94
      %p96 = scmp.ne.s32.totalorder %s88, %s91
      %p97 = scmp.eq.s32.totalorder %s15, 0
      %p98 = por %p96, %p97
      %p99 = scmp.ne.s32.totalorder %s88, %s91
      %p100 = scmp.eq.s32.totalorder %s20, 1
      %p101 = por %p99, %p100
      %p102 = scmp.ne.s32.totalorder %s91, %s92
      %p103 = scmp.eq.s32.totalorder %s20, 0
      %p104 = por %p102, %p103
      %p105 = scmp.ne.s32.totalorder %s91, %s92
      %p106 = scmp.eq.s32.totalorder %s21, 1
      %p107 = por %p105, %p106
      %p109 = scmp.ne.s32.totalorder %s92, %s108
      %p110 = scmp.eq.s32.totalorder %s21, 0
      %p111 = por %p109, %p110
      %p112 = scmp.le.s32.totalorder 1, %s15
      %p113 = scmp.lt.s32.totalorder %s15, 3
      %p114 = pnand %p112, %p113
      %p115 = pneg %p114
      // Predicated region
      $region9: #{tpu_custom_call.1} parent=5 // pred_check
        _
      $region10: #{tpu_custom_call.1} parent=5 // pred_check_branch
        %117 = sbr.rel (%p114) target = $region12
      $region11: #{tpu_custom_call.1} parent=5 // pred_region
        %s118 = ssub.s32 %s15, 1
        // Predicated region
        $region13: #{tpu_custom_call.1} parent=11 // pred_check
          %p119 = pneg %p76
        $region14: #{tpu_custom_call.1} parent=11 // pred_check_branch
          %121 = sbr.rel (%p119) target = $region16
        $region15: #{tpu_custom_call.1} parent=11 // pred_region
          %123 = vsyncadd [#allocation6], 0
          %s125 = sshll.u32 %s1, 4
          %s126 = int_to_ptr.hbm [resolvable:$true] %s125
          %s127 = sshll.u32 [#allocation5], 4
          %s128 = int_to_ptr.vmem [resolvable:$true] %s127
          %130 = dma.hbm_to_vmem [thread:$0]  %s126, 16, %s128, [#allocation6]
        $region16: #{tpu_custom_call.1} parent=11 // pred_fallthru
          _
      $region12: #{tpu_custom_call.1} parent=5 // pred_fallthru
        _
      %p131 = scmp.lt.s32.totalorder %s15, 2
      // Predicated region
      $region17: #{tpu_custom_call.1} parent=5 // pred_check
        %p132 = pneg %p131
      $region18: #{tpu_custom_call.1} parent=5 // pred_check_branch
        %134 = sbr.rel (%p132) target = $region20
      $region19: #{tpu_custom_call.1} parent=5 // pred_region
        // Predicated region
        $region21: #{tpu_custom_call.1} parent=19 // pred_check
          %p135 = pneg %p49
        $region22: #{tpu_custom_call.1} parent=19 // pred_check_branch
          %137 = sbr.rel (%p135) target = $region24
        $region23: #{tpu_custom_call.1} parent=19 // pred_region
          %s138 = sand.u32 %s39, 1
          %s139 = scalar_lea.sflag [#allocation3], %s138
          %s140 = sand.u32 %s39, 1
          %s141 = smul.addr %s140, 128
          %s142 = scalar_lea.vmem [#allocation2], %s141
          %s143 = smul.u32 2, %s23
          %145 = vsyncadd %s139, 0
          %s146 = smul.addr %s22, 16
          %s147 = sadd.s32 %s143, %s146
          %s148 = smul.addr %s147, 8
          %s149 = scalar_lea.hbm %s0, %s148
          %s150 = sshll.u32 %s149, 4
          %s151 = int_to_ptr.hbm [resolvable:$true] %s150
          %s152 = sshll.u32 %s142, 4
          %s153 = int_to_ptr.vmem [resolvable:$true] %s152
          %158 = dma.hbm_to_vmem [thread:$0]  %s151, 2048, %s153, %s139, 256, 256, 16
        $region24: #{tpu_custom_call.1} parent=19 // pred_fallthru
          _
      $region20: #{tpu_custom_call.1} parent=5 // pred_fallthru
        _
      %p159 = scmp.le.s32.totalorder 1, %s15
      %p160 = scmp.lt.s32.totalorder %s15, 3
      %p161 = pnand %p159, %p160
      %p162 = pneg %p161
      // Predicated region
      $region25: #{tpu_custom_call.1} parent=5 // pred_check
        _
      $region26: #{tpu_custom_call.1} parent=5 // pred_check_branch
        %164 = sbr.rel (%p161) target = $region28
      $region27: #{tpu_custom_call.1} parent=5 // pred_region
        %s165 = ssub.s32 %s15, 1
        %s166 = sand.u32 %s42, 1
        %s167 = scalar_lea.sflag [#allocation3], %s166
        %s168 = sand.u32 %s42, 1
        %s169 = smul.addr %s168, 128
        %s170 = scalar_lea.vmem [#allocation2], %s169
        // Predicated region
        $region29: #{tpu_custom_call.1} parent=27 // pred_check
          %p171 = pneg %p55
        $region30: #{tpu_custom_call.1} parent=27 // pred_check_branch
          %173 = sbr.rel (%p171) target = $region32
        $region31: #{tpu_custom_call.1} parent=27 // pred_region
          %175 = dma.done %s167, 2048
        $region32: #{tpu_custom_call.1} parent=27 // pred_fallthru
          _
        // Predicated region
        $region33: #{tpu_custom_call.1} parent=27 // pred_check
          %p176 = pneg %p76
        $region34: #{tpu_custom_call.1} parent=27 // pred_check_branch
          %178 = sbr.rel (%p176) target = $region36
        $region35: #{tpu_custom_call.1} parent=27 // pred_region
          %180 = dma.done [#allocation6], 16
        $region36: #{tpu_custom_call.1} parent=27 // pred_fallthru
          _
        %s181 = sand.u32 %s42, 1
        %s182 = scalar_lea.sflag [#allocation3], %s181
        %s183 = sand.u32 %s42, 1
        %s184 = smul.addr %s183, 128
        %s185 = scalar_lea.vmem [#allocation2], %s184
        %p186 = pneg %p55
        %p187 = pneg %p52
        %p188 = pneg %p76
        %p189 = pneg %p73
        %p190 = pneg %p104
        %p191 = pneg %p101
        %s192 = sand.u32 %s91, 1
        %s193 = scalar_lea.sflag [#allocation4], %s192
        %s194 = sand.u32 %s91, 1
        %s195 = smul.addr %s194, 2
        %s196 = scalar_lea.vmem [#allocation7], %s195
        %s197 = smul.u32 2, %s25
        %s198 = smul.u32 2, %s25
        %v199 = vld [vmem:[%s170] sm:$0xff]
        %v200 = vld [vmem:[%s170 + $0x8] sm:$0xff]
        %v201 = vld [vmem:[%s170 + $0x10] sm:$0xff]
        %v202 = vld [vmem:[%s170 + $0x18] sm:$0xff]
        %v203 = vld [vmem:[%s170 + $0x20] sm:$0xff]
        %v204 = vld [vmem:[%s170 + $0x28] sm:$0xff]
        %v205 = vld [vmem:[%s170 + $0x30] sm:$0xff]
        %v206 = vld [vmem:[%s170 + $0x38] sm:$0xff]
        %v207 = vld [vmem:[%s170 + $0x40] sm:$0xff]
        %v208 = vld [vmem:[%s170 + $0x48] sm:$0xff]
        %v209 = vld [vmem:[%s170 + $0x50] sm:$0xff]
        %v210 = vld [vmem:[%s170 + $0x58] sm:$0xff]
        %v211 = vld [vmem:[%s170 + $0x60] sm:$0xff]
        %v212 = vld [vmem:[%s170 + $0x68] sm:$0xff]
        %v213 = vld [vmem:[%s170 + $0x70] sm:$0xff]
        %v214 = vld [vmem:[%s170 + $0x78] sm:$0xff]
        %v215 = vld [vmem:[#allocation5] sm:$0x1]
        %vm216 = vcmask 523264
        %v218 = vsel %vm216, %v215, 0
        %220 = vmatpush.msra.mxu0 0.0
        %221 = vmatpush.msra.mxu0 0.0
        %222 = vmatpush.msra.mxu0 0.0
        %223 = vmatpush.msra.mxu0 0.0
        %224 = vmatpush.msra.mxu0 0.0
        %225 = vmatpush.msra.mxu0 0.0
        %226 = vmatpush.msra.mxu0 0.0
        %227 = vmatpush.msra.mxu0 0.0
        %228 = vmatpush.msra.mxu0 %v213
        %229 = vmatpush.msra.mxu0 %v211
        %230 = vmatpush.msra.mxu0 %v209
        %231 = vmatpush.msra.mxu0 %v207
        %232 = vmatpush.msra.mxu0 %v205
        %233 = vmatpush.msra.mxu0 %v203
        %234 = vmatpush.msra.mxu0 %v201
        %235 = vmatpush.msra.mxu0 %v199
        %236 = vmatmul.f32.gmra.mxu0 %v218
        %v237 = vpop.f32.mrf.mxu0
        %v238 = vadd.f32 0.0, %v237
        %239 = vdwg.mxu0
        %240 = vmatpush.msra.mxu0 0.0
        %241 = vmatpush.msra.mxu0 0.0
        %242 = vmatpush.msra.mxu0 0.0
        %243 = vmatpush.msra.mxu0 0.0
        %244 = vmatpush.msra.mxu0 0.0
        %245 = vmatpush.msra.mxu0 0.0
        %246 = vmatpush.msra.mxu0 0.0
        %247 = vmatpush.msra.mxu0 0.0
        %248 = vmatpush.msra.mxu0 %v214
        %249 = vmatpush.msra.mxu0 %v212
        %250 = vmatpush.msra.mxu0 %v210
        %251 = vmatpush.msra.mxu0 %v208
        %252 = vmatpush.msra.mxu0 %v206
        %253 = vmatpush.msra.mxu0 %v204
        %254 = vmatpush.msra.mxu0 %v202
        %255 = vmatpush.msra.mxu0 %v200
        %256 = vmatmul.f32.gmra.mxu0 %v218
        %v257 = vpop.f32.mrf.mxu0
        %v258 = vadd.f32 0.0, %v257
        %259 = vdwg.mxu0
        %v262 = vrot.slane %v258, 7
        %vm263 = vcmask 1040384
        %v264 = vsel %vm263, %v238, %v262
        %v266 = vlaneseq
        %vm267 = vcmp.ge.s32.totalorder %v266, 0
        %vm268 = vcmp.lt.s32.totalorder %v266, 256
        %vm269 = vmand %vm267, %vm268
        %270 = vst.msk [vmem:[%s196] sm:$0x3] %vm269, %v264
        %s271 = sand.u32 %s91, 1
        %s272 = scalar_lea.sflag [#allocation4], %s271
        %s273 = sand.u32 %s91, 1
        %s274 = smul.addr %s273, 2
        %s275 = scalar_lea.vmem [#allocation7], %s274
        // Predicated region
        $region37: #{tpu_custom_call.1} parent=27 // pred_check
          %p276 = pneg %p101
        $region38: #{tpu_custom_call.1} parent=27 // pred_check_branch
          %278 = sbr.rel (%p276) target = $region40
        $region39: #{tpu_custom_call.1} parent=27 // pred_region
          %s279 = smul.u32 2, %s25
          %281 = vsyncadd %s272, 0
          %s282 = smul.addr %s24, 2
          %s283 = sadd.s32 %s279, %s282
          %s284 = scalar_lea.hbm %s2, %s283
          %s286 = sshll.u32 %s275, 4
          %s287 = int_to_ptr.vmem [resolvable:$true] %s286
          %s288 = sshll.u32 %s284, 4
          %s289 = int_to_ptr.hbm [resolvable:$true] %s288
          %291 = dma.vmem_to_hbm [thread:$0]  %s287, 32, %s289, %s272
        $region40: #{tpu_custom_call.1} parent=27 // pred_fallthru
          _
      $region28: #{tpu_custom_call.1} parent=5 // pred_fallthru
        _
      %p292 = scmp.le.s32.totalorder 2, %s15
      // Predicated region
      $region41: #{tpu_custom_call.1} parent=5 // pred_check
        %p293 = pneg %p292
      $region42: #{tpu_custom_call.1} parent=5 // pred_check_branch
        %295 = sbr.rel (%p293) target = $region44
      $region43: #{tpu_custom_call.1} parent=5 // pred_region
        %s296 = ssub.s32 %s15, 2
        // Predicated region
        $region45: #{tpu_custom_call.1} parent=43 // pred_check
          %p297 = pneg %p107
        $region46: #{tpu_custom_call.1} parent=43 // pred_check_branch
          %299 = sbr.rel (%p297) target = $region48
        $region47: #{tpu_custom_call.1} parent=43 // pred_region
          %s300 = sand.u32 %s92, 1
          %s301 = scalar_lea.sflag [#allocation4], %s300
          %s302 = sand.u32 %s92, 1
          %s303 = smul.addr %s302, 2
          %s304 = scalar_lea.vmem [#allocation7], %s303
          %306 = dma.done %s301, 32
        $region48: #{tpu_custom_call.1} parent=43 // pred_fallthru
          _
      $region44: #{tpu_custom_call.1} parent=5 // pred_fallthru
        _
    $region6: #{tpu_custom_call.1} parent=1 // loop_footer
      %s19 = sadd.s32 1, %s15
    $region7: #{tpu_custom_call.1} parent=1 // loop_footer_branch
      %14 = sbr.rel target = $region3
    $region8: #{tpu_custom_call.1} parent=1 // loop_exit
      _
    %307 = vsyncpa [#allocation3], 1
    %s308 = scalar_lea.sflag [#allocation3], 1
    %309 = vsyncpa %s308, 1
    %310 = vsyncpa [#allocation6], 1
    %311 = vsyncpa [#allocation4], 1
    %s312 = scalar_lea.sflag [#allocation4], 1
    %313 = vsyncpa %s312, 1

</llo_original>
